<compile_context>
chip_gen: v6e
topology: v6e:2x2x1
jax: 0.10.0
libtpu: 0.0.40
codegen_flags: <defaults>
</compile_context>

<pallas_src>
import jax
import jax.numpy as jnp
from jax.experimental import pallas as pl
from jax.experimental.pallas import tpu as pltpu


def _prompter_kernel(x_ref, w1_ref, w2_ref, o_ref):
    # Stage 1 (tiny, recomputed per step; fills MXU slack under the W2 DMA).
    h = jnp.dot(x_ref[...], w1_ref[...], preferred_element_type=jnp.float32)
    h = jnp.maximum(h, 0.0).astype(w2_ref.dtype)
    # Stage 2 (hot): stream one W2 column-tile; f32 accumulation on the MXU.
    o_ref[...] = jnp.dot(h, w2_ref[...],
                         preferred_element_type=jnp.float32).astype(o_ref.dtype)


def prepare_prompter_weights(w1, w2, *, stream_dtype=jnp.bfloat16):
    """Cast W2 ONCE at weight-load time (outside the forward path) so the
    forward never pays an f32->bf16 re-cast round trip through HBM."""
    return w1, w2.astype(stream_dtype)


def _pick_tn(N, H, Bp, w2_bytes, out_bytes, resident_bytes, tile_budget,
             *, n_w2_bufs=3, dma_target_bytes=4 << 20):
    """Largest output-tile width (lane-dense, divides N) fitting the VMEM
    budget; prefers an even step count when per-step DMA is still >= target."""
    cands = [t for t in range(256, N + 1, 256) if N % t == 0]
    if not cands:
        cands = [t for t in range(128, N + 1, 128) if N % t == 0]
    if not cands:
        # TODO(synk): masked last-tile path for very large non-128-aligned N.
        return N  # single full-width block (block dims == array dims is legal)

    def fits(t):
        need = (n_w2_bufs * H * t * w2_bytes      # multi-buffered W2 tile
                + 2 * Bp * t * out_bytes          # double-buffered output tile
                + resident_bytes)                 # resident x / W1 blocks
        return need <= tile_budget

    fitting = [t for t in cands if fits(t)]
    if not fitting:
        return cands[0]
    even_big = [t for t in fitting
                if (N // t) % 2 == 0 and H * t * w2_bytes >= dma_target_bytes]
    return max(even_big) if even_big else max(fitting)


def prompter_forward(x, w1, w2, num_layers, prompt_length, model_dim):
    """x: [B, embed_dim] -> [B, num_layers, prompt_length, model_dim]."""
    B, E = x.shape
    E1, H = w1.shape
    H2, N = w2.shape
    assert E1 == E and H2 == H
    assert N == num_layers * prompt_length * model_dim

    out_dtype = x.dtype
    x_bytes = jnp.dtype(x.dtype).itemsize
    w1_bytes = jnp.dtype(w1.dtype).itemsize
    w2_bytes = jnp.dtype(w2.dtype).itemsize
    out_bytes = jnp.dtype(out_dtype).itemsize

    # Pad batch to a full sublane tile of the OUTPUT dtype (8 rows for f32,
    # 16 for bf16) -> unmasked vst on the output slab.
    row_tile = 8 if out_bytes >= 4 else 16
    Bp = max(row_tile, ((B + row_tile - 1) // row_tile) * row_tile)
    xp = x if Bp == B else jnp.pad(x, ((0, Bp - B), (0, 0)))

    # VMEM sizing: adapts to the part (v7x 64 MiB, v5e/v6e 128 MiB).
    try:
        vmem_cap = int(pltpu.get_tpu_info().vmem_capacity_bytes)
    except Exception:
        vmem_cap = 64 * 1024 * 1024  # conservative (v7x) fallback
    tile_budget = (vmem_cap * 2) // 3
    resident_bytes = 2 * (Bp * E * x_bytes + E * H * w1_bytes)

    tn = _pick_tn(N, H, Bp, w2_bytes, out_bytes, resident_bytes, tile_budget)
    steps = N // tn

    vmem_need = (3 * H * tn * w2_bytes + 2 * Bp * tn * out_bytes
                 + resident_bytes)
    vmem_limit = min((vmem_cap * 3) // 4, max(32 << 20, (vmem_need * 3) // 2))
    if vmem_limit < vmem_need:  # defensive (only possible on fallback paths)
        vmem_limit = min(vmem_cap, vmem_need + (8 << 20))

    # Triple-buffer the streamed W2 tiles so the DMA engine never idles
    # between steps (only when there are enough steps to benefit).
    w2_index = lambda j: (0, j)
    if steps >= 3:
        try:
            w2_spec = pl.BlockSpec((H, tn), w2_index,
                                   pipeline_mode=pl.Buffered(3))
        except TypeError:  # older jax without pipeline_mode kwarg
            w2_spec = pl.BlockSpec((H, tn), w2_index)
    else:
        w2_spec = pl.BlockSpec((H, tn), w2_index)

    cost = pl.CostEstimate(
        flops=2 * Bp * H * N + 2 * Bp * E * H * steps,
        transcendentals=0,
        bytes_accessed=(H * N * w2_bytes + Bp * E * x_bytes
                        + E * H * w1_bytes + Bp * N * out_bytes),
    )

    out2d = pl.pallas_call(
        _prompter_kernel,
        out_shape=jax.ShapeDtypeStruct((Bp, N), out_dtype),
        grid=(steps,),
        in_specs=[
            pl.BlockSpec((Bp, E), lambda j: (0, 0)),   # x: resident
            pl.BlockSpec((E, H), lambda j: (0, 0)),    # W1: resident
            w2_spec,                                   # W2: streamed operand
        ],
        out_specs=pl.BlockSpec((Bp, tn), lambda j: (0, j)),
        compiler_params=pltpu.CompilerParams(
            dimension_semantics=("parallel",),
            vmem_limit_bytes=int(vmem_limit)),
        cost_estimate=cost,
    )(xp, w1, w2)

    # TODO(synk): nn.Dropout omitted (identity at inference); training-mode
    # dropout would use pltpu.prng_seed + pltpu.prng_random_bits in-kernel.
    out2d = out2d[:B]
    return out2d.reshape(B, num_layers, prompt_length, model_dim)


if __name__ == "__main__":
    # Small config consistent with the module's __init__ / forward:
    batch = 2
    embed_dim = 32
    prompt_hidden_dim = 64
    hidden_size = 32          # plm_config.hidden_size  -> model_dim
    num_hidden_layers = 8     # -> num_layers = 8 // 2 = 4
    prompt_length = 8

    num_layers = num_hidden_layers // 2
    model_dim = hidden_size
    out_dim = model_dim * num_layers * prompt_length  # 32 * 4 * 8 = 1024

    key = jax.random.PRNGKey(0)
    kx, k1, k2 = jax.random.split(key, 3)
    x = jax.random.normal(kx, (batch, embed_dim), dtype=jnp.float32)
    # Deterministic synthetic weights (~Linear default scale 1/sqrt(fan_in)).
    w1 = jax.random.normal(k1, (embed_dim, prompt_hidden_dim),
                           dtype=jnp.float32) / jnp.sqrt(embed_dim)
    w2_f32 = jax.random.normal(k2, (prompt_hidden_dim, out_dim),
                               dtype=jnp.float32) / jnp.sqrt(prompt_hidden_dim)

    # One-time weight prep (W2 -> bf16); the forward path never re-casts it.
    w1p, w2p = prepare_prompter_weights(w1, w2_f32)

    fwd = jax.jit(prompter_forward, static_argnums=(3, 4, 5))
    out = fwd(x, w1p, w2p, num_layers, prompt_length, model_dim)
    out = jax.block_until_ready(out)

    # Reference in plain JAX with the same numerics (f32 stage-1, bf16 h/W2,
    # f32 accumulation).
    h_ref = jnp.maximum(x @ w1, 0.0).astype(jnp.bfloat16)
    ref = jnp.dot(h_ref, w2_f32.astype(jnp.bfloat16),
                  preferred_element_type=jnp.float32).astype(x.dtype)
    ref = ref.reshape(batch, num_layers, prompt_length, model_dim)

    assert out.shape == (batch, num_layers, prompt_length, model_dim)
    err = float(jnp.max(jnp.abs(out - ref)))
    assert jnp.allclose(out, ref, atol=2e-2, rtol=2e-2), err

    print("KERNEL_OK")
</pallas_src>

<mosaic_0001>
module attributes {stable_mosaic.version = 11 : i64} {
  func.func @_prompter_kernel(%arg0: i32, %arg1: memref<8x32xf32, #tpu.memory_space<vmem>>, %arg2: memref<32x64xf32, #tpu.memory_space<vmem>>, %arg3: memref<64x1024xbf16, #tpu.memory_space<vmem>>, %arg4: memref<8x1024xf32, #tpu.memory_space<vmem>>) attributes {dimension_semantics = [#tpu.dimension_semantics<parallel>], iteration_bounds = array<i64: 1>, scalar_prefetch = 0 : i64, scratch_operands = 0 : i64, tpu.core_type = #tpu.core_type<tc>, window_params = [{pipeline_mode = #tpu.pipeline_mode<synchronous>, transform_indices = @transform_0, window_bounds = array<i64: 8, 32>}, {pipeline_mode = #tpu.pipeline_mode<synchronous>, transform_indices = @transform_1, window_bounds = array<i64: 32, 64>}, {transform_indices = @transform_2, window_bounds = array<i64: 64, 1024>}, {transform_indices = @transform_3, window_bounds = array<i64: 8, 1024>}]} {
    %c0 = arith.constant 0 : index
    %c0_0 = arith.constant 0 : index
    %0 = vector.load %arg1[%c0, %c0_0] : memref<8x32xf32, #tpu.memory_space<vmem>>, vector<8x32xf32>
    %c0_1 = arith.constant 0 : index
    %c0_2 = arith.constant 0 : index
    %1 = vector.load %arg2[%c0_1, %c0_2] : memref<32x64xf32, #tpu.memory_space<vmem>>, vector<32x64xf32>
    %cst = arith.constant dense<0.000000e+00> : vector<8x64xf32>
    %2 = tpu.matmul %0, %1, %cst {dimension_numbers = #tpu.dot_dimension_numbers<[1], [0], [0], [1], [0, 0, 1, 1], [], []>} : vector<8x32xf32>, vector<32x64xf32>, vector<8x64xf32> -> vector<8x64xf32>
    %cst_3 = arith.constant 0.000000e+00 : f32
    %3 = vector.broadcast %cst_3 : f32 to vector<8x64xf32>
    %4 = arith.maximumf %2, %3 : vector<8x64xf32>
    %5 = arith.truncf %4 : vector<8x64xf32> to vector<8x64xbf16>
    %c0_4 = arith.constant 0 : index
    %c0_5 = arith.constant 0 : index
    %6 = vector.load %arg3[%c0_4, %c0_5] : memref<64x1024xbf16, #tpu.memory_space<vmem>>, vector<64x1024xbf16>
    %cst_6 = arith.constant dense<0.000000e+00> : vector<8x1024xf32>
    %7 = tpu.matmul %5, %6, %cst_6 {dimension_numbers = #tpu.dot_dimension_numbers<[1], [0], [0], [1], [0, 0, 1, 1], [], []>} : vector<8x64xbf16>, vector<64x1024xbf16>, vector<8x1024xf32> -> vector<8x1024xf32>
    %c0_7 = arith.constant 0 : index
    %c0_8 = arith.constant 0 : index
    %8 = vector.load %arg4[%c0_7, %c0_8] : memref<8x1024xf32, #tpu.memory_space<vmem>>, vector<8x1024xf32>
    tpu.vector_store %arg4[%c0_7, %c0_8], %7 {strides = array<i32>} : memref<8x1024xf32, #tpu.memory_space<vmem>>, vector<8x1024xf32>,
    return
  }
  func.func @transform_0(%arg0: i32) -> (i32, i32) {
    %c0_i32 = arith.constant 0 : i32
    %c0_i32_0 = arith.constant 0 : i32
    %c0_i32_1 = arith.constant 0 : i32
    return %c0_i32, %c0_i32_0 : i32, i32
  }
  func.func @transform_1(%arg0: i32) -> (i32, i32) {
    %c0_i32 = arith.constant 0 : i32
    %c0_i32_0 = arith.constant 0 : i32
    %c0_i32_1 = arith.constant 0 : i32
    return %c0_i32, %c0_i32_0 : i32, i32
  }
  func.func @transform_2(%arg0: i32) -> (i32, i32) {
    %c0_i32 = arith.constant 0 : i32
    %c0_i32_0 = arith.constant 0 : i32
    return %c0_i32, %arg0 : i32, i32
  }
  func.func @transform_3(%arg0: i32) -> (i32, i32) {
    %c0_i32 = arith.constant 0 : i32
    %c0_i32_0 = arith.constant 0 : i32
    return %c0_i32, %arg0 : i32, i32
  }
}

</mosaic_0001>

<llo_original>
// kernel: prompter_forward.1
$region0: #{prompter_forward.1}
  #allocation0 [shape = 'u32[]', space=smem, size = 0x4, offset = 0x4, fixed_abs, tag = 'smem constant byte address 0x4 - core index']
  #allocation1 [shape = 'u32[144,128]{1,0:T(1,128)}', space=vmem, size = 0x12000, scoped, tag = 'internal scratch']
  %s0 = inlined_call_operand.vmem [shape: f32[8,32], index: 0, kind: input, shape index: {}]
  %s1 = inlined_call_operand.hbm [shape: f32[32,64], index: 1, kind: input, shape index: {}]
  %s2 = inlined_call_operand.hbm [shape: bf16[64,1024], index: 2, kind: input, shape index: {}]
  %s3 = inlined_call_operand.vmem [shape: f32[8,1024], index: 3, kind: output, shape index: {}]
  %s4 = sld [smem:[#allocation0]]
  $region30: #{prompter_forward.1} parent=0
    _
  %s6 = ssub.s32 1, %s4
  %s7 = scalar_select 0, %s6, %s4
  $region1: #{prompter_forward.1} parent=0
    #allocation2 [shape = 'u8[16384]{0}', space=vmem, size = 0x4000, scoped, tag = 'input window, operand 1, single buffered']
    #allocation3 [shape = 's32[1]{0}', space=sflag, size = 0x4, scoped, tag = 'scoped memory for prompter_forward.1']
    #allocation4 [shape = 'u8[131072]{0}', space=vmem, size = 0x20000, scoped, tag = 'input window, operand 2, single buffered']
    #allocation5 [shape = 's32[1]{0}', space=sflag, size = 0x4, scoped, tag = 'scoped memory for prompter_forward.1']
    %8 = vsyncpa [#allocation3], 0
    %9 = vsyncpa [#allocation5], 0
    // Predicated region
    $region2: #{prompter_forward.1} parent=1 // pred_check
      _
    $region3: #{prompter_forward.1} parent=1 // pred_check_branch
      %11 = sbr.rel (0) target = $region5
    $region4: #{prompter_forward.1} parent=1 // pred_region
      _
    $region5: #{prompter_forward.1} parent=1 // pred_fallthru
      _
    // Predicated region
    $region6: #{prompter_forward.1} parent=1 // pred_check
      _
    $region7: #{prompter_forward.1} parent=1 // pred_check_branch
      %13 = sbr.rel (0) target = $region9
    $region8: #{prompter_forward.1} parent=1 // pred_region
      %s15 = ssub.s32 512, 512
      %16 = vsyncadd [#allocation3], %s15
      %s17 = sshll.u32 [#allocation2], 4
      %s18 = int_to_ptr.vmem [resolvable:$true] %s17
      %23 = dma.hbm_to_vmem [thread:$0]  %s1, 512, %s18, [#allocation3], 128, 128, 8
    $region9: #{prompter_forward.1} parent=1 // pred_fallthru
      _
    // Predicated region
    $region10: #{prompter_forward.1} parent=1 // pred_check
      _
    $region11: #{prompter_forward.1} parent=1 // pred_check_branch
      %25 = sbr.rel (0) target = $region13
    $region12: #{prompter_forward.1} parent=1 // pred_region
      %s27 = ssub.s32 4096, 4096
      %28 = vsyncadd [#allocation5], %s27
      %s29 = sshll.u32 [#allocation4], 4
      %s30 = int_to_ptr.vmem [resolvable:$true] %s29
      %35 = dma.hbm_to_vmem [thread:$0]  %s2, 4096, %s30, [#allocation5], 512, 512, 32
    $region13: #{prompter_forward.1} parent=1 // pred_fallthru
      _
    // Predicated region
    $region14: #{prompter_forward.1} parent=1 // pred_check
      _
    $region15: #{prompter_forward.1} parent=1 // pred_check_branch
      %37 = sbr.rel (0) target = $region17
    $region16: #{prompter_forward.1} parent=1 // pred_region
      %38 = dma.done [#allocation3], 512
    $region17: #{prompter_forward.1} parent=1 // pred_fallthru
      _
    // Predicated region
    $region18: #{prompter_forward.1} parent=1 // pred_check
      _
    $region19: #{prompter_forward.1} parent=1 // pred_check_branch
      %40 = sbr.rel (0) target = $region21
    $region20: #{prompter_forward.1} parent=1 // pred_region
      %41 = dma.done [#allocation5], 4096
    $region21: #{prompter_forward.1} parent=1 // pred_fallthru
      _
    %v43 = vld [vmem:[%s0] sm:$0xff]
    %v44 = vld [vmem:[#allocation2] sm:$0xff]
    %v45 = vld [vmem:[#allocation2 + $0x8] sm:$0xff]
    %v46 = vld [vmem:[#allocation2 + $0x10] sm:$0xff]
    %v47 = vld [vmem:[#allocation2 + $0x18] sm:$0xff]
    %vm48 = vcmask 261120
    %v50 = vsel %vm48, %v43, 0
    %52 = vmatprep.subr.mxu0 0.0
    %53 = vmatpush1.msra.mxu0 0.0
    %54 = vmatprep.subr.mxu0 0.0
    %55 = vmatpush1.msra.mxu0 0.0
    %56 = vmatprep.subr.mxu0 0.0
    %57 = vmatpush1.msra.mxu0 0.0
    %58 = vmatprep.subr.mxu0 0.0
    %59 = vmatpush1.msra.mxu0 0.0
    %60 = vmatprep.subr.mxu0 0.0
    %61 = vmatpush1.msra.mxu0 0.0
    %62 = vmatprep.subr.mxu0 0.0
    %63 = vmatpush1.msra.mxu0 0.0
    %64 = vmatprep.subr.mxu0 0.0
    %65 = vmatpush1.msra.mxu0 0.0
    %66 = vmatprep.subr.mxu0 0.0
    %67 = vmatpush1.msra.mxu0 0.0
    %68 = vmatprep.subr.mxu0 0.0
    %69 = vmatpush1.msra.mxu0 0.0
    %70 = vmatprep.subr.mxu0 0.0
    %71 = vmatpush1.msra.mxu0 0.0
    %72 = vmatprep.subr.mxu0 0.0
    %73 = vmatpush1.msra.mxu0 0.0
    %74 = vmatprep.subr.mxu0 0.0
    %75 = vmatpush1.msra.mxu0 0.0
    %76 = vmatprep.subr.mxu0 0.0
    %77 = vmatpush1.msra.mxu0 %v47
    %78 = vmatprep.subr.mxu0 0.0
    %79 = vmatpush1.msra.mxu0 %v46
    %80 = vmatprep.subr.mxu0 0.0
    %81 = vmatpush1.msra.mxu0 %v45
    %82 = vmatprep.subr.mxu0 0.0
    %83 = vmatpush1.msra.mxu0 %v44
    %84 = vmatprep.subr.mxu0 0.0
    %85 = vmatpush2.msra.mxu0 0.0
    %86 = vmatprep.subr.mxu0 0.0
    %87 = vmatpush2.msra.mxu0 0.0
    %88 = vmatprep.subr.mxu0 0.0
    %89 = vmatpush2.msra.mxu0 0.0
    %90 = vmatprep.subr.mxu0 0.0
    %91 = vmatpush2.msra.mxu0 0.0
    %92 = vmatprep.subr.mxu0 0.0
    %93 = vmatpush2.msra.mxu0 0.0
    %94 = vmatprep.subr.mxu0 0.0
    %95 = vmatpush2.msra.mxu0 0.0
    %96 = vmatprep.subr.mxu0 0.0
    %97 = vmatpush2.msra.mxu0 0.0
    %98 = vmatprep.subr.mxu0 0.0
    %99 = vmatpush2.msra.mxu0 0.0
    %100 = vmatprep.subr.mxu0 0.0
    %101 = vmatpush2.msra.mxu0 0.0
    %102 = vmatprep.subr.mxu0 0.0
    %103 = vmatpush2.msra.mxu0 0.0
    %104 = vmatprep.subr.mxu0 0.0
    %105 = vmatpush2.msra.mxu0 0.0
    %106 = vmatprep.subr.mxu0 0.0
    %107 = vmatpush2.msra.mxu0 0.0
    %108 = vmatprep.subr.mxu0 0.0
    %109 = vmatpush2.msra.mxu0 0.0
    %110 = vmatprep.subr.mxu0 0.0
    %111 = vmatpush2.msra.mxu0 0.0
    %112 = vmatprep.subr.mxu0 0.0
    %113 = vmatpush2.msra.mxu0 0.0
    %114 = vmatprep.subr.mxu0 0.0
    %115 = vmatpush2.msra.mxu0 0.0
    %116 = vmatprep.mubr.f32.mxu0 0.0
    %117 = vmatmul.mubr.f32.gmra.mxu0 %v50
    %v118 = vpop.f32.mrf.mxu0
    %v119 = vadd.f32 0.0, %v118
    %v120 = vpop.f32.mrf.mxu0
    %121 = vdwg.mxu0
    %v122 = vmax.f32 %v119, 0.0
    %v123 = vpack.c.bf16 %v122, %v122
    %v124 = vld [vmem:[#allocation4] sm:$0xff]
    %v125 = vld [vmem:[#allocation4 + $0x8] sm:$0xff]
    %v126 = vld [vmem:[#allocation4 + $0x10] sm:$0xff]
    %v127 = vld [vmem:[#allocation4 + $0x18] sm:$0xff]
    %v128 = vld [vmem:[#allocation4 + $0x20] sm:$0xff]
    %v129 = vld [vmem:[#allocation4 + $0x28] sm:$0xff]
    %v130 = vld [vmem:[#allocation4 + $0x30] sm:$0xff]
    %v131 = vld [vmem:[#allocation4 + $0x38] sm:$0xff]
    %v132 = vld [vmem:[#allocation4 + $0x40] sm:$0xff]
    %v133 = vld [vmem:[#allocation4 + $0x48] sm:$0xff]
    %v134 = vld [vmem:[#allocation4 + $0x50] sm:$0xff]
    %v135 = vld [vmem:[#allocation4 + $0x58] sm:$0xff]
    %v136 = vld [vmem:[#allocation4 + $0x60] sm:$0xff]
    %v137 = vld [vmem:[#allocation4 + $0x68] sm:$0xff]
    %v138 = vld [vmem:[#allocation4 + $0x70] sm:$0xff]
    %v139 = vld [vmem:[#allocation4 + $0x78] sm:$0xff]
    %v140 = vld [vmem:[#allocation4 + $0x80] sm:$0xff]
    %v141 = vld [vmem:[#allocation4 + $0x88] sm:$0xff]
    %v142 = vld [vmem:[#allocation4 + $0x90] sm:$0xff]
    %v143 = vld [vmem:[#allocation4 + $0x98] sm:$0xff]
    %v144 = vld [vmem:[#allocation4 + $0xa0] sm:$0xff]
    %v145 = vld [vmem:[#allocation4 + $0xa8] sm:$0xff]
    %v146 = vld [vmem:[#allocation4 + $0xb0] sm:$0xff]
    %v147 = vld [vmem:[#allocation4 + $0xb8] sm:$0xff]
    %v148 = vld [vmem:[#allocation4 + $0xc0] sm:$0xff]
    %v149 = vld [vmem:[#allocation4 + $0xc8] sm:$0xff]
    %v150 = vld [vmem:[#allocation4 + $0xd0] sm:$0xff]
    %v151 = vld [vmem:[#allocation4 + $0xd8] sm:$0xff]
    %v152 = vld [vmem:[#allocation4 + $0xe0] sm:$0xff]
    %v153 = vld [vmem:[#allocation4 + $0xe8] sm:$0xff]
    %v154 = vld [vmem:[#allocation4 + $0xf0] sm:$0xff]
    %v155 = vld [vmem:[#allocation4 + $0xf8] sm:$0xff]
    %v188 = vunpack.c.l.b16 %v124
    %v189 = vunpack.c.h.b16 %v124
    %v190 = vunpack.c.l.b16 %v125
    %v191 = vunpack.c.h.b16 %v125
    %v192 = vunpack.c.l.b16 %v126
    %v193 = vunpack.c.h.b16 %v126
    %v194 = vunpack.c.l.b16 %v127
    %v195 = vunpack.c.h.b16 %v127
    %v196 = vunpack.c.l.b16 %v128
    %v197 = vunpack.c.h.b16 %v128
    %v198 = vunpack.c.l.b16 %v129
    %v199 = vunpack.c.h.b16 %v129
    %v200 = vunpack.c.l.b16 %v130
    %v201 = vunpack.c.h.b16 %v130
    %v202 = vunpack.c.l.b16 %v131
    %v203 = vunpack.c.h.b16 %v131
    %v204 = vunpack.c.l.b16 %v132
    %v205 = vunpack.c.h.b16 %v132
    %v206 = vunpack.c.l.b16 %v133
    %v207 = vunpack.c.h.b16 %v133
    %v208 = vunpack.c.l.b16 %v134
    %v209 = vunpack.c.h.b16 %v134
    %v210 = vunpack.c.l.b16 %v135
    %v211 = vunpack.c.h.b16 %v135
    %v212 = vunpack.c.l.b16 %v136
    %v213 = vunpack.c.h.b16 %v136
    %v214 = vunpack.c.l.b16 %v137
    %v215 = vunpack.c.h.b16 %v137
    %v216 = vunpack.c.l.b16 %v138
    %v217 = vunpack.c.h.b16 %v138
    %v218 = vunpack.c.l.b16 %v139
    %v219 = vunpack.c.h.b16 %v139
    %v220 = vunpack.c.l.b16 %v140
    %v221 = vunpack.c.h.b16 %v140
    %v222 = vunpack.c.l.b16 %v141
    %v223 = vunpack.c.h.b16 %v141
    %v224 = vunpack.c.l.b16 %v142
    %v225 = vunpack.c.h.b16 %v142
    %v226 = vunpack.c.l.b16 %v143
    %v227 = vunpack.c.h.b16 %v143
    %v228 = vunpack.c.l.b16 %v144
    %v229 = vunpack.c.h.b16 %v144
    %v230 = vunpack.c.l.b16 %v145
    %v231 = vunpack.c.h.b16 %v145
    %v232 = vunpack.c.l.b16 %v146
    %v233 = vunpack.c.h.b16 %v146
    %v234 = vunpack.c.l.b16 %v147
    %v235 = vunpack.c.h.b16 %v147
    %v236 = vunpack.c.l.b16 %v148
    %v237 = vunpack.c.h.b16 %v148
    %v238 = vunpack.c.l.b16 %v149
    %v239 = vunpack.c.h.b16 %v149
    %v240 = vunpack.c.l.b16 %v150
    %v241 = vunpack.c.h.b16 %v150
    %v242 = vunpack.c.l.b16 %v151
    %v243 = vunpack.c.h.b16 %v151
    %v244 = vunpack.c.l.b16 %v152
    %v245 = vunpack.c.h.b16 %v152
    %v246 = vunpack.c.l.b16 %v153
    %v247 = vunpack.c.h.b16 %v153
    %v248 = vunpack.c.l.b16 %v154
    %v249 = vunpack.c.h.b16 %v154
    %v250 = vunpack.c.l.b16 %v155
    %v251 = vunpack.c.h.b16 %v155
    %v252 = vpack.c.b16 %v196, %v188
    %v253 = vpack.c.b16 %v197, %v189
    %v254 = vpack.c.b16 %v198, %v190
    %v255 = vpack.c.b16 %v199, %v191
    %v256 = vpack.c.b16 %v200, %v192
    %v257 = vpack.c.b16 %v201, %v193
    %v258 = vpack.c.b16 %v202, %v194
    %v259 = vpack.c.b16 %v203, %v195
    %v260 = vpack.c.b16 %v212, %v204
    %v261 = vpack.c.b16 %v213, %v205
    %v262 = vpack.c.b16 %v214, %v206
    %v263 = vpack.c.b16 %v215, %v207
    %v264 = vpack.c.b16 %v216, %v208
    %v265 = vpack.c.b16 %v217, %v209
    %v266 = vpack.c.b16 %v218, %v210
    %v267 = vpack.c.b16 %v219, %v211
    %v268 = vpack.c.b16 %v228, %v220
    %v269 = vpack.c.b16 %v229, %v221
    %v270 = vpack.c.b16 %v230, %v222
    %v271 = vpack.c.b16 %v231, %v223
    %v272 = vpack.c.b16 %v232, %v224
    %v273 = vpack.c.b16 %v233, %v225
    %v274 = vpack.c.b16 %v234, %v226
    %v275 = vpack.c.b16 %v235, %v227
    %v276 = vpack.c.b16 %v244, %v236
    %v277 = vpack.c.b16 %v245, %v237
    %v278 = vpack.c.b16 %v246, %v238
    %v279 = vpack.c.b16 %v247, %v239
    %v280 = vpack.c.b16 %v248, %v240
    %v281 = vpack.c.b16 %v249, %v241
    %v282 = vpack.c.b16 %v250, %v242
    %v283 = vpack.c.b16 %v251, %v243
    %vm316 = vcmask 523264
    %v318 = vsel %vm316, %v123, 0
    %320 = vmatprep.subr.bf16.mxu0 0
    %321 = vmatpush1.bf16.msra.mxu0 0
    %322 = vmatprep.subr.bf16.mxu0 0
    %323 = vmatpush1.bf16.msra.mxu0 0
    %324 = vmatprep.subr.bf16.mxu0 0
    %325 = vmatpush1.bf16.msra.mxu0 0
    %326 = vmatprep.subr.bf16.mxu0 0
    %327 = vmatpush1.bf16.msra.mxu0 0
    %328 = vmatprep.subr.bf16.mxu0 %v277
    %329 = vmatpush1.bf16.msra.mxu0 %v276
    %330 = vmatprep.subr.bf16.mxu0 %v269
    %331 = vmatpush1.bf16.msra.mxu0 %v268
    %332 = vmatprep.subr.bf16.mxu0 %v261
    %333 = vmatpush1.bf16.msra.mxu0 %v260
    %334 = vmatprep.subr.bf16.mxu0 %v253
    %335 = vmatpush1.bf16.msra.mxu0 %v252
    %336 = vmatprep.subr.bf16.mxu0 0
    %337 = vmatpush2.bf16.msra.mxu0 0
    %338 = vmatprep.subr.bf16.mxu0 0
    %339 = vmatpush2.bf16.msra.mxu0 0
    %340 = vmatprep.subr.bf16.mxu0 0
    %341 = vmatpush2.bf16.msra.mxu0 0
    %342 = vmatprep.subr.bf16.mxu0 0
    %343 = vmatpush2.bf16.msra.mxu0 0
    %344 = vmatprep.subr.bf16.mxu0 0
    %345 = vmatpush2.bf16.msra.mxu0 0
    %346 = vmatprep.subr.bf16.mxu0 0
    %347 = vmatpush2.bf16.msra.mxu0 0
    %348 = vmatprep.subr.bf16.mxu0 0
    %349 = vmatpush2.bf16.msra.mxu0 0
    %350 = vmatprep.subr.bf16.mxu0 0
    %351 = vmatpush2.bf16.msra.mxu0 0
    %352 = vmatprep.mubr.bf16.mxu0 0
    %353 = vmatmul.mubr.bf16.gmra.mxu0 %v318
    %v354 = vpop.f32.mrf.mxu0
    %v355 = vadd.f32 0.0, %v354
    %v356 = vpop.f32.mrf.mxu0
    %v357 = vadd.f32 0.0, %v356
    %v358 = vpop.f32.mrf.mxu0
    %v359 = vpop.f32.mrf.mxu0
    %360 = vdwg.mxu0
    %361 = vmatprep.subr.bf16.mxu0 0
    %362 = vmatpush1.bf16.msra.mxu0 0
    %363 = vmatprep.subr.bf16.mxu0 0
    %364 = vmatpush1.bf16.msra.mxu0 0
    %365 = vmatprep.subr.bf16.mxu0 0
    %366 = vmatpush1.bf16.msra.mxu0 0
    %367 = vmatprep.subr.bf16.mxu0 0
    %368 = vmatpush1.bf16.msra.mxu0 0
    %369 = vmatprep.subr.bf16.mxu0 %v279
    %370 = vmatpush1.bf16.msra.mxu0 %v278
    %371 = vmatprep.subr.bf16.mxu0 %v271
    %372 = vmatpush1.bf16.msra.mxu0 %v270
    %373 = vmatprep.subr.bf16.mxu0 %v263
    %374 = vmatpush1.bf16.msra.mxu0 %v262
    %375 = vmatprep.subr.bf16.mxu0 %v255
    %376 = vmatpush1.bf16.msra.mxu0 %v254
    %377 = vmatprep.subr.bf16.mxu0 0
    %378 = vmatpush2.bf16.msra.mxu0 0
    %379 = vmatprep.subr.bf16.mxu0 0
    %380 = vmatpush2.bf16.msra.mxu0 0
    %381 = vmatprep.subr.bf16.mxu0 0
    %382 = vmatpush2.bf16.msra.mxu0 0
    %383 = vmatprep.subr.bf16.mxu0 0
    %384 = vmatpush2.bf16.msra.mxu0 0
    %385 = vmatprep.subr.bf16.mxu0 0
    %386 = vmatpush2.bf16.msra.mxu0 0
    %387 = vmatprep.subr.bf16.mxu0 0
    %388 = vmatpush2.bf16.msra.mxu0 0
    %389 = vmatprep.subr.bf16.mxu0 0
    %390 = vmatpush2.bf16.msra.mxu0 0
    %391 = vmatprep.subr.bf16.mxu0 0
    %392 = vmatpush2.bf16.msra.mxu0 0
    %393 = vmatprep.mubr.bf16.mxu0 0
    %394 = vmatmul.mubr.bf16.gmra.mxu0 %v318
    %v395 = vpop.f32.mrf.mxu0
    %v396 = vadd.f32 0.0, %v395
    %v397 = vpop.f32.mrf.mxu0
    %v398 = vadd.f32 0.0, %v397
    %v399 = vpop.f32.mrf.mxu0
    %v400 = vpop.f32.mrf.mxu0
    %401 = vdwg.mxu0
    %402 = vmatprep.subr.bf16.mxu0 0
    %403 = vmatpush1.bf16.msra.mxu0 0
    %404 = vmatprep.subr.bf16.mxu0 0
    %405 = vmatpush1.bf16.msra.mxu0 0
    %406 = vmatprep.subr.bf16.mxu0 0
    %407 = vmatpush1.bf16.msra.mxu0 0
    %408 = vmatprep.subr.bf16.mxu0 0
    %409 = vmatpush1.bf16.msra.mxu0 0
    %410 = vmatprep.subr.bf16.mxu0 %v281
    %411 = vmatpush1.bf16.msra.mxu0 %v280
    %412 = vmatprep.subr.bf16.mxu0 %v273
    %413 = vmatpush1.bf16.msra.mxu0 %v272
    %414 = vmatprep.subr.bf16.mxu0 %v265
    %415 = vmatpush1.bf16.msra.mxu0 %v264
    %416 = vmatprep.subr.bf16.mxu0 %v257
    %417 = vmatpush1.bf16.msra.mxu0 %v256
    %418 = vmatprep.subr.bf16.mxu0 0
    %419 = vmatpush2.bf16.msra.mxu0 0
    %420 = vmatprep.subr.bf16.mxu0 0
    %421 = vmatpush2.bf16.msra.mxu0 0
    %422 = vmatprep.subr.bf16.mxu0 0
    %423 = vmatpush2.bf16.msra.mxu0 0
    %424 = vmatprep.subr.bf16.mxu0 0
    %425 = vmatpush2.bf16.msra.mxu0 0
    %426 = vmatprep.subr.bf16.mxu0 0
    %427 = vmatpush2.bf16.msra.mxu0 0
    %428 = vmatprep.subr.bf16.mxu0 0
    %429 = vmatpush2.bf16.msra.mxu0 0
    %430 = vmatprep.subr.bf16.mxu0 0
    %431 = vmatpush2.bf16.msra.mxu0 0
    %432 = vmatprep.subr.bf16.mxu0 0
    %433 = vmatpush2.bf16.msra.mxu0 0
    %434 = vmatprep.mubr.bf16.mxu0 0
    %435 = vmatmul.mubr.bf16.gmra.mxu0 %v318
    %v436 = vpop.f32.mrf.mxu0
    %v437 = vadd.f32 0.0, %v436
    %v438 = vpop.f32.mrf.mxu0
    %v439 = vadd.f32 0.0, %v438
    %v440 = vpop.f32.mrf.mxu0
    %v441 = vpop.f32.mrf.mxu0
    %442 = vdwg.mxu0
    %443 = vmatprep.subr.bf16.mxu0 0
    %444 = vmatpush1.bf16.msra.mxu0 0
    %445 = vmatprep.subr.bf16.mxu0 0
    %446 = vmatpush1.bf16.msra.mxu0 0
    %447 = vmatprep.subr.bf16.mxu0 0
    %448 = vmatpush1.bf16.msra.mxu0 0
    %449 = vmatprep.subr.bf16.mxu0 0
    %450 = vmatpush1.bf16.msra.mxu0 0
    %451 = vmatprep.subr.bf16.mxu0 %v283
    %452 = vmatpush1.bf16.msra.mxu0 %v282
    %453 = vmatprep.subr.bf16.mxu0 %v275
    %454 = vmatpush1.bf16.msra.mxu0 %v274
    %455 = vmatprep.subr.bf16.mxu0 %v267
    %456 = vmatpush1.bf16.msra.mxu0 %v266
    %457 = vmatprep.subr.bf16.mxu0 %v259
    %458 = vmatpush1.bf16.msra.mxu0 %v258
    %459 = vmatprep.subr.bf16.mxu0 0
    %460 = vmatpush2.bf16.msra.mxu0 0
    %461 = vmatprep.subr.bf16.mxu0 0
    %462 = vmatpush2.bf16.msra.mxu0 0
    %463 = vmatprep.subr.bf16.mxu0 0
    %464 = vmatpush2.bf16.msra.mxu0 0
    %465 = vmatprep.subr.bf16.mxu0 0
    %466 = vmatpush2.bf16.msra.mxu0 0
    %467 = vmatprep.subr.bf16.mxu0 0
    %468 = vmatpush2.bf16.msra.mxu0 0
    %469 = vmatprep.subr.bf16.mxu0 0
    %470 = vmatpush2.bf16.msra.mxu0 0
    %471 = vmatprep.subr.bf16.mxu0 0
    %472 = vmatpush2.bf16.msra.mxu0 0
    %473 = vmatprep.subr.bf16.mxu0 0
    %474 = vmatpush2.bf16.msra.mxu0 0
    %475 = vmatprep.mubr.bf16.mxu0 0
    %476 = vmatmul.mubr.bf16.gmra.mxu0 %v318
    %v477 = vpop.f32.mrf.mxu0
    %v478 = vadd.f32 0.0, %v477
    %v479 = vpop.f32.mrf.mxu0
    %v480 = vadd.f32 0.0, %v479
    %v481 = vpop.f32.mrf.mxu0
    %v482 = vpop.f32.mrf.mxu0
    %483 = vdwg.mxu0
    %484 = vst [vmem:[%s3] sm:$0xff] %v355
    %485 = vst [vmem:[%s3 + $0x8] sm:$0xff] %v357
    %486 = vst [vmem:[%s3 + $0x10] sm:$0xff] %v396
    %487 = vst [vmem:[%s3 + $0x18] sm:$0xff] %v398
    %488 = vst [vmem:[%s3 + $0x20] sm:$0xff] %v437
    %489 = vst [vmem:[%s3 + $0x28] sm:$0xff] %v439
    %490 = vst [vmem:[%s3 + $0x30] sm:$0xff] %v478
    %491 = vst [vmem:[%s3 + $0x38] sm:$0xff] %v480
    // Predicated region
    $region22: #{prompter_forward.1} parent=1 // pred_check
      _
    $region23: #{prompter_forward.1} parent=1 // pred_check_branch
      %493 = sbr.rel (0) target = $region25
    $region24: #{prompter_forward.1} parent=1 // pred_region
      _
    $region25: #{prompter_forward.1} parent=1 // pred_fallthru
      _
    // Predicated region
    $region26: #{prompter_forward.1} parent=1 // pred_check
      _
    $region27: #{prompter_forward.1} parent=1 // pred_check_branch
      %495 = sbr.rel (0) target = $region29
    $region28: #{prompter_forward.1} parent=1 // pred_region
      _
    $region29: #{prompter_forward.1} parent=1 // pred_fallthru
      _
    %496 = vsyncpa [#allocation3], 1
    %497 = vsyncpa [#allocation5], 1

</llo_original>
